<compile_context>
chip_gen: v6e
topology: v6e:2x2x1
jax: 0.10.0
libtpu: 0.0.40
codegen_flags: <defaults>
</compile_context>

<pallas_src>
import math

import jax
import jax.numpy as jnp
from jax import lax
from jax.experimental import pallas as pl
from jax.experimental.pallas import tpu as pltpu

INPUT_FEATURES = 43
ENCODED_LEN = 10
HIDDEN = 20

# Contract the shared `in_features` axis of x:(bt, in) and W:(out, in),
# i.e. x @ W^T, with no explicit transpose anywhere.
_NT = (((1,), (1,)), ((), ()))


def _ae_kernel(x_ref,
               w1_ref, b1_ref,
               w2_ref, b2_ref,
               w3_ref, b3_ref,
               w4_ref, b4_ref,
               o_ref):
    x = x_ref[...]                      # (bt, 43): batch on sublanes, rows contiguous
    dt = x.dtype

    # encoder
    h = lax.dot_general(x, w1_ref[...], _NT, preferred_element_type=jnp.float32)
    h = jnp.maximum(h + b1_ref[...], 0.0).astype(dt)                 # (bt, 20)
    h = lax.dot_general(h, w2_ref[...], _NT, preferred_element_type=jnp.float32)
    h = jnp.maximum(h + b2_ref[...], 0.0).astype(dt)                 # (bt, 10)

    # decoder
    h = lax.dot_general(h, w3_ref[...], _NT, preferred_element_type=jnp.float32)
    h = jnp.maximum(h + b3_ref[...], 0.0).astype(dt)                 # (bt, 20)
    y = lax.dot_general(h, w4_ref[...], _NT, preferred_element_type=jnp.float32)
    y = y + b4_ref[...]                                              # (bt, 43)

    # Exact sigmoid: exp + divide run on the EUP, which has huge slack here.
    o_ref[...] = (1.0 / (1.0 + jnp.exp(-y))).astype(o_ref.dtype)


def _auto_batch_tile(B, cap=4096):
    """Largest reasonable tile that keeps >=2 grid steps and modest padding."""
    steps = max(2, -(-B // cap))            # >=2 steps: v7x megacore + pipelining
    tile = -(-B // steps)                   # split batch about evenly
    tile = ((tile + 127) // 128) * 128      # 128-row alignment
    return max(128, min(cap, tile))


def cp_autoencoder_forward(x, params, *, batch_tile=None, vmem_limit_bytes=None):
    """Forward pass.

    x: (B, input_features) row-major, float32 or bfloat16.
    params: dict with w1..w4 in PyTorch (out, in) layout and b1..b4 as (1, out).
    """
    B, F = x.shape
    assert F == INPUT_FEATURES
    if batch_tile is None:
        batch_tile = _auto_batch_tile(B)
    assert batch_tile % 8 == 0, "batch_tile must be a multiple of 8 (use 128k)"

    B_pad = -(-B // batch_tile) * batch_tile
    if B_pad != B:
        x = jnp.pad(x, ((0, B_pad - B), (0, 0)))

    grid = (B_pad // batch_tile,)

    w1, b1 = params["w1"], params["b1"]
    w2, b2 = params["w2"], params["b2"]
    w3, b3 = params["w3"], params["b3"]
    w4, b4 = params["w4"], params["b4"]

    def resident(a):
        # Full array, block index constant across the grid -> stays in VMEM.
        return pl.BlockSpec(a.shape, lambda i: (0, 0))

    in_specs = [
        pl.BlockSpec((batch_tile, F), lambda i: (i, 0)),
        resident(w1), resident(b1),
        resident(w2), resident(b2),
        resident(w3), resident(b3),
        resident(w4), resident(b4),
    ]
    out_spec = pl.BlockSpec((batch_tile, F), lambda i: (i, 0))

    itemsize = jnp.dtype(x.dtype).itemsize
    if vmem_limit_bytes is None:
        # A full-lane-width value at this tile occupies batch_tile*128*itemsize
        # bytes in VMEM (the 43/20/10-wide minors pad to 128 lanes).  Budget the
        # double-buffered in/out blocks plus live intermediates, with headroom.
        per_val = batch_tile * 128 * itemsize
        est = 16 * per_val + (8 << 20)
        if est > (12 << 20):  # beyond what default scoped VMEM (16 MiB on v5e) covers
            vmem_limit_bytes = int(min(max(est, 24 << 20), 48 << 20))

    flops = 2 * B_pad * (F * HIDDEN + HIDDEN * ENCODED_LEN
                         + ENCODED_LEN * HIDDEN + HIDDEN * F)
    param_bytes = sum(int(p.size) * jnp.dtype(p.dtype).itemsize
                      for p in (w1, b1, w2, b2, w3, b3, w4, b4))
    cost = pl.CostEstimate(
        flops=flops,
        transcendentals=B_pad * F,                     # exp in the sigmoid
        bytes_accessed=2 * B_pad * F * itemsize + param_bytes,
    )

    out = pl.pallas_call(
        _ae_kernel,
        out_shape=jax.ShapeDtypeStruct((B_pad, F), x.dtype),
        grid_spec=pltpu.PrefetchScalarGridSpec(
            num_scalar_prefetch=0,
            grid=grid,
            in_specs=in_specs,
            out_specs=out_spec,
        ),
        compiler_params=pltpu.CompilerParams(
            dimension_semantics=("parallel",),
            vmem_limit_bytes=vmem_limit_bytes,
        ),
        cost_estimate=cost,
    )(x, w1, b1, w2, b2, w3, b3, w4, b4)

    return out if B_pad == B else out[:B]


def init_params(key, dtype=jnp.float32):
    """nn.Linear-style init (uniform +/- 1/sqrt(fan_in)).

    Weights in PyTorch layout (out_features, in_features); biases (1, out)."""
    dims = [
        (INPUT_FEATURES, HIDDEN),   # encoder[0]
        (HIDDEN, ENCODED_LEN),      # encoder[2]
        (ENCODED_LEN, HIDDEN),      # decoder[0]
        (HIDDEN, INPUT_FEATURES),   # decoder[2]
    ]
    params = {}
    for idx, (fan_in, fan_out) in enumerate(dims, start=1):
        key, kw, kb = jax.random.split(key, 3)
        bound = 1.0 / math.sqrt(fan_in)
        params[f"w{idx}"] = jax.random.uniform(
            kw, (fan_out, fan_in), dtype, minval=-bound, maxval=bound)
        params[f"b{idx}"] = jax.random.uniform(
            kb, (1, fan_out), dtype, minval=-bound, maxval=bound)
    return params


def reference_forward(x, p):
    h = jnp.maximum(x @ p["w1"].T + p["b1"], 0.0)
    h = jnp.maximum(h @ p["w2"].T + p["b2"], 0.0)
    h = jnp.maximum(h @ p["w3"].T + p["b3"], 0.0)
    return jax.nn.sigmoid(h @ p["w4"].T + p["b4"])


if __name__ == "__main__":
    key = jax.random.PRNGKey(0)
    key, kx = jax.random.split(key)
    params = init_params(key)

    # Auto tile -> 128 rows, grid=(2,): exercises the double-buffered pipeline
    # and the parallel (megacore) grid axis.
    B = 256
    x = jax.random.normal(kx, (B, INPUT_FEATURES), jnp.float32)
    out = jax.block_until_ready(cp_autoencoder_forward(x, params))
    ref = reference_forward(x, params)
    assert out.shape == (B, INPUT_FEATURES)
    # MXU f32 dots run at reduced per-pass precision by default -> modest atol.
    assert jnp.allclose(out, ref, atol=1e-2, rtol=0.0), \
        float(jnp.max(jnp.abs(out - ref)))

    # Ragged batch exercising the pad-and-slice path (B_pad=128, 28 pad rows).
    key, kx2 = jax.random.split(key)
    B2 = 100
    x2 = jax.random.normal(kx2, (B2, INPUT_FEATURES), jnp.float32)
    out2 = jax.block_until_ready(cp_autoencoder_forward(x2, params))
    ref2 = reference_forward(x2, params)
    assert out2.shape == (B2, INPUT_FEATURES)
    assert jnp.allclose(out2, ref2, atol=1e-2, rtol=0.0), \
        float(jnp.max(jnp.abs(out2 - ref2)))

    print("KERNEL_OK")
</pallas_src>

<mosaic_0001>
module attributes {stable_mosaic.version = 11 : i64} {
  func.func @_ae_kernel(%arg0: i32, %arg1: memref<128x43xf32, #tpu.memory_space<vmem>>, %arg2: memref<20x43xf32, #tpu.memory_space<vmem>>, %arg3: memref<1x20xf32, #tpu.memory_space<vmem>>, %arg4: memref<10x20xf32, #tpu.memory_space<vmem>>, %arg5: memref<1x10xf32, #tpu.memory_space<vmem>>, %arg6: memref<20x10xf32, #tpu.memory_space<vmem>>, %arg7: memref<1x20xf32, #tpu.memory_space<vmem>>, %arg8: memref<43x20xf32, #tpu.memory_space<vmem>>, %arg9: memref<1x43xf32, #tpu.memory_space<vmem>>, %arg10: memref<128x43xf32, #tpu.memory_space<vmem>>) attributes {dimension_semantics = [#tpu.dimension_semantics<parallel>], iteration_bounds = array<i64: 2>, scalar_prefetch = 0 : i64, scratch_operands = 0 : i64, tpu.core_type = #tpu.core_type<tc>, window_params = [{transform_indices = @transform_0, window_bounds = array<i64: 128, 43>}, {pipeline_mode = #tpu.pipeline_mode<synchronous>, transform_indices = @transform_1, window_bounds = array<i64: 20, 43>}, {pipeline_mode = #tpu.pipeline_mode<synchronous>, transform_indices = @transform_2, window_bounds = array<i64: 1, 20>}, {pipeline_mode = #tpu.pipeline_mode<synchronous>, transform_indices = @transform_3, window_bounds = array<i64: 10, 20>}, {pipeline_mode = #tpu.pipeline_mode<synchronous>, transform_indices = @transform_4, window_bounds = array<i64: 1, 10>}, {pipeline_mode = #tpu.pipeline_mode<synchronous>, transform_indices = @transform_5, window_bounds = array<i64: 20, 10>}, {pipeline_mode = #tpu.pipeline_mode<synchronous>, transform_indices = @transform_6, window_bounds = array<i64: 1, 20>}, {pipeline_mode = #tpu.pipeline_mode<synchronous>, transform_indices = @transform_7, window_bounds = array<i64: 43, 20>}, {pipeline_mode = #tpu.pipeline_mode<synchronous>, transform_indices = @transform_8, window_bounds = array<i64: 1, 43>}, {transform_indices = @transform_9, window_bounds = array<i64: 128, 43>}]} {
    %c0 = arith.constant 0 : index
    %c0_0 = arith.constant 0 : index
    %0 = vector.load %arg1[%c0, %c0_0] : memref<128x43xf32, #tpu.memory_space<vmem>>, vector<128x43xf32>
    %c0_1 = arith.constant 0 : index
    %c0_2 = arith.constant 0 : index
    %1 = vector.load %arg2[%c0_1, %c0_2] : memref<20x43xf32, #tpu.memory_space<vmem>>, vector<20x43xf32>
    %cst = arith.constant dense<0.000000e+00> : vector<128x20xf32>
    %2 = tpu.matmul %0, %1, %cst {dimension_numbers = #tpu.dot_dimension_numbers<[1], [1], [0], [0], [0, 0, 1, 0], [], []>} : vector<128x43xf32>, vector<20x43xf32>, vector<128x20xf32> -> vector<128x20xf32>
    %c0_3 = arith.constant 0 : index
    %c0_4 = arith.constant 0 : index
    %3 = vector.load %arg3[%c0_3, %c0_4] : memref<1x20xf32, #tpu.memory_space<vmem>>, vector<1x20xf32>
    %4 = vector.broadcast %3 : vector<1x20xf32> to vector<128x20xf32>
    %5 = arith.addf %2, %4 : vector<128x20xf32>
    %cst_5 = arith.constant 0.000000e+00 : f32
    %6 = vector.broadcast %cst_5 : f32 to vector<128x20xf32>
    %7 = arith.maximumf %5, %6 : vector<128x20xf32>
    %c0_6 = arith.constant 0 : index
    %c0_7 = arith.constant 0 : index
    %8 = vector.load %arg4[%c0_6, %c0_7] : memref<10x20xf32, #tpu.memory_space<vmem>>, vector<10x20xf32>
    %cst_8 = arith.constant dense<0.000000e+00> : vector<128x10xf32>
    %9 = tpu.matmul %7, %8, %cst_8 {dimension_numbers = #tpu.dot_dimension_numbers<[1], [1], [0], [0], [0, 0, 1, 0], [], []>} : vector<128x20xf32>, vector<10x20xf32>, vector<128x10xf32> -> vector<128x10xf32>
    %c0_9 = arith.constant 0 : index
    %c0_10 = arith.constant 0 : index
    %10 = vector.load %arg5[%c0_9, %c0_10] : memref<1x10xf32, #tpu.memory_space<vmem>>, vector<1x10xf32>
    %11 = vector.broadcast %10 : vector<1x10xf32> to vector<128x10xf32>
    %12 = arith.addf %9, %11 : vector<128x10xf32>
    %cst_11 = arith.constant 0.000000e+00 : f32
    %13 = vector.broadcast %cst_11 : f32 to vector<128x10xf32>
    %14 = arith.maximumf %12, %13 : vector<128x10xf32>
    %c0_12 = arith.constant 0 : index
    %c0_13 = arith.constant 0 : index
    %15 = vector.load %arg6[%c0_12, %c0_13] : memref<20x10xf32, #tpu.memory_space<vmem>>, vector<20x10xf32>
    %cst_14 = arith.constant dense<0.000000e+00> : vector<128x20xf32>
    %16 = tpu.matmul %14, %15, %cst_14 {dimension_numbers = #tpu.dot_dimension_numbers<[1], [1], [0], [0], [0, 0, 1, 0], [], []>} : vector<128x10xf32>, vector<20x10xf32>, vector<128x20xf32> -> vector<128x20xf32>
    %c0_15 = arith.constant 0 : index
    %c0_16 = arith.constant 0 : index
    %17 = vector.load %arg7[%c0_15, %c0_16] : memref<1x20xf32, #tpu.memory_space<vmem>>, vector<1x20xf32>
    %18 = vector.broadcast %17 : vector<1x20xf32> to vector<128x20xf32>
    %19 = arith.addf %16, %18 : vector<128x20xf32>
    %cst_17 = arith.constant 0.000000e+00 : f32
    %20 = vector.broadcast %cst_17 : f32 to vector<128x20xf32>
    %21 = arith.maximumf %19, %20 : vector<128x20xf32>
    %c0_18 = arith.constant 0 : index
    %c0_19 = arith.constant 0 : index
    %22 = vector.load %arg8[%c0_18, %c0_19] : memref<43x20xf32, #tpu.memory_space<vmem>>, vector<43x20xf32>
    %cst_20 = arith.constant dense<0.000000e+00> : vector<128x43xf32>
    %23 = tpu.matmul %21, %22, %cst_20 {dimension_numbers = #tpu.dot_dimension_numbers<[1], [1], [0], [0], [0, 0, 1, 0], [], []>} : vector<128x20xf32>, vector<43x20xf32>, vector<128x43xf32> -> vector<128x43xf32>
    %c0_21 = arith.constant 0 : index
    %c0_22 = arith.constant 0 : index
    %24 = vector.load %arg9[%c0_21, %c0_22] : memref<1x43xf32, #tpu.memory_space<vmem>>, vector<1x43xf32>
    %25 = vector.broadcast %24 : vector<1x43xf32> to vector<128x43xf32>
    %26 = arith.addf %23, %25 : vector<128x43xf32>
    %cst_23 = arith.constant 0.000000e+00 : f32
    %27 = vector.broadcast %cst_23 : f32 to vector<128x43xf32>
    %28 = arith.subf %27, %26 : vector<128x43xf32>
    %29 = math.exp %28 : vector<128x43xf32>
    %cst_24 = arith.constant 1.000000e+00 : f32
    %30 = vector.broadcast %cst_24 : f32 to vector<128x43xf32>
    %31 = arith.addf %30, %29 : vector<128x43xf32>
    %cst_25 = arith.constant 1.000000e+00 : f32
    %32 = vector.broadcast %cst_25 : f32 to vector<128x43xf32>
    %33 = arith.divf %32, %31 : vector<128x43xf32>
    %c0_26 = arith.constant 0 : index
    %c0_27 = arith.constant 0 : index
    %34 = vector.load %arg10[%c0_26, %c0_27] : memref<128x43xf32, #tpu.memory_space<vmem>>, vector<128x43xf32>
    tpu.vector_store %arg10[%c0_26, %c0_27], %33 {strides = array<i32>} : memref<128x43xf32, #tpu.memory_space<vmem>>, vector<128x43xf32>,
    return
  }
  func.func @transform_0(%arg0: i32) -> (i32, i32) {
    %c0_i32 = arith.constant 0 : i32
    %c0_i32_0 = arith.constant 0 : i32
    return %arg0, %c0_i32 : i32, i32
  }
  func.func @transform_1(%arg0: i32) -> (i32, i32) {
    %c0_i32 = arith.constant 0 : i32
    %c0_i32_0 = arith.constant 0 : i32
    %c0_i32_1 = arith.constant 0 : i32
    return %c0_i32, %c0_i32_0 : i32, i32
  }
  func.func @transform_2(%arg0: i32) -> (i32, i32) {
    %c0_i32 = arith.constant 0 : i32
    %c0_i32_0 = arith.constant 0 : i32
    %c0_i32_1 = arith.constant 0 : i32
    return %c0_i32, %c0_i32_0 : i32, i32
  }
  func.func @transform_3(%arg0: i32) -> (i32, i32) {
    %c0_i32 = arith.constant 0 : i32
    %c0_i32_0 = arith.constant 0 : i32
    %c0_i32_1 = arith.constant 0 : i32
    return %c0_i32, %c0_i32_0 : i32, i32
  }
  func.func @transform_4(%arg0: i32) -> (i32, i32) {
    %c0_i32 = arith.constant 0 : i32
    %c0_i32_0 = arith.constant 0 : i32
    %c0_i32_1 = arith.constant 0 : i32
    return %c0_i32, %c0_i32_0 : i32, i32
  }
  func.func @transform_5(%arg0: i32) -> (i32, i32) {
    %c0_i32 = arith.constant 0 : i32
    %c0_i32_0 = arith.constant 0 : i32
    %c0_i32_1 = arith.constant 0 : i32
    return %c0_i32, %c0_i32_0 : i32, i32
  }
  func.func @transform_6(%arg0: i32) -> (i32, i32) {
    %c0_i32 = arith.constant 0 : i32
    %c0_i32_0 = arith.constant 0 : i32
    %c0_i32_1 = arith.constant 0 : i32
    return %c0_i32, %c0_i32_0 : i32, i32
  }
  func.func @transform_7(%arg0: i32) -> (i32, i32) {
    %c0_i32 = arith.constant 0 : i32
    %c0_i32_0 = arith.constant 0 : i32
    %c0_i32_1 = arith.constant 0 : i32
    return %c0_i32, %c0_i32_0 : i32, i32
  }
  func.func @transform_8(%arg0: i32) -> (i32, i32) {
    %c0_i32 = arith.constant 0 : i32
    %c0_i32_0 = arith.constant 0 : i32
    %c0_i32_1 = arith.constant 0 : i32
    return %c0_i32, %c0_i32_0 : i32, i32
  }
  func.func @transform_9(%arg0: i32) -> (i32, i32) {
    %c0_i32 = arith.constant 0 : i32
    %c0_i32_0 = arith.constant 0 : i32
    return %arg0, %c0_i32 : i32, i32
  }
}

</mosaic_0001>

<llo_original>
// kernel: tpu_custom_call.1
$region0: #{tpu_custom_call.1}
  #allocation0 [shape = 'u32[]', space=smem, size = 0x4, offset = 0x4, fixed_abs, tag = 'smem constant byte address 0x4 - core index']
  #allocation1 [shape = 'u32[144,128]{1,0:T(1,128)}', space=vmem, size = 0x12000, scoped, tag = 'internal scratch']
  %s0 = inlined_call_operand.vmem [shape: f32[256,43], index: 0, kind: input, shape index: {}]
  %s1 = inlined_call_operand.vmem [shape: f32[20,43], index: 1, kind: input, shape index: {}]
  %s2 = inlined_call_operand.vmem [shape: f32[1,20], index: 2, kind: input, shape index: {}]
  %s3 = inlined_call_operand.vmem [shape: f32[10,20], index: 3, kind: input, shape index: {}]
  %s4 = inlined_call_operand.vmem [shape: f32[1,10], index: 4, kind: input, shape index: {}]
  %s5 = inlined_call_operand.vmem [shape: f32[20,10], index: 5, kind: input, shape index: {}]
  %s6 = inlined_call_operand.vmem [shape: f32[1,20], index: 6, kind: input, shape index: {}]
  %s7 = inlined_call_operand.vmem [shape: f32[43,20], index: 7, kind: input, shape index: {}]
  %s8 = inlined_call_operand.vmem [shape: f32[1,43], index: 8, kind: input, shape index: {}]
  %s9 = inlined_call_operand.vmem [shape: f32[256,43], index: 9, kind: output, shape index: {}]
  %s10 = sld [smem:[#allocation0]]
  $region69: #{tpu_custom_call.1} parent=0
    _
  %s12 = ssub.s32 1, %s10
  %s13 = scalar_select 0, %s12, %s10
  loop: start=0, step=1, limit=4
  $region2: #{tpu_custom_call.1} parent=0 // loop_pre_header
    _
  $region3: #{tpu_custom_call.1} parent=0 // loop_header
    %s15 = sphi 0, %s19
    %p16 = scmp.ge.s32.totalorder %s15, 4
    %s25 = sphi 0, %s27
    %s28 = sphi 0, %s25
    %s29 = sphi 0, %s28
    %s45 = sphi 0, %s29
    %s49 = sphi 0, %s49
    %s51 = sphi 0, %s49
    %s52 = sphi 0, %s51
    %s66 = sphi 0, %s52
    %s70 = sphi 0, %s70
    %s72 = sphi 0, %s70
    %s73 = sphi 0, %s72
    %s87 = sphi 0, %s73
    %s91 = sphi 0, %s91
    %s93 = sphi 0, %s91
    %s94 = sphi 0, %s93
    %s108 = sphi 0, %s94
    %s112 = sphi 0, %s112
    %s114 = sphi 0, %s112
    %s115 = sphi 0, %s114
    %s129 = sphi 0, %s115
    %s133 = sphi 0, %s133
    %s135 = sphi 0, %s133
    %s136 = sphi 0, %s135
    %s150 = sphi 0, %s136
    %s154 = sphi 0, %s154
    %s156 = sphi 0, %s154
    %s157 = sphi 0, %s156
    %s171 = sphi 0, %s157
    %s175 = sphi 0, %s175
    %s177 = sphi 0, %s175
    %s178 = sphi 0, %s177
    %s192 = sphi 0, %s178
    %s196 = sphi 0, %s196
    %s198 = sphi 0, %s196
    %s199 = sphi 0, %s198
    %s213 = sphi 0, %s199
    %s219 = sphi 0, %s221
    %s222 = sphi 0, %s219
    %s223 = sphi 0, %s222
    %s239 = sphi 0, %s223
  $region4: #{tpu_custom_call.1} parent=0 // loop_header_branch
    %18 = sbr.rel (%p16) target = $region8
  $region5: #{tpu_custom_call.1} parent=0 // loop_body
    %s20 = ssub.s32 %s15, 1
    %s21 = ssub.s32 %s15, 2
    %s22 = sadd.s32 %s15, 1
    %s23 = ssub.s32 %s15, %s22
    %p24 = scmp.eq.s32.totalorder %s23, 0
    %s26 = sadd.s32 %s25, 1
    %s27 = scalar_select %p24, %s25, %s26
    %p30 = pneg %p24
    %p31 = scmp.eq.s32.totalorder %s15, 1
    %p32 = por %p30, %p31
    %p33 = scmp.ne.s32.totalorder %s25, %s28
    %p34 = scmp.eq.s32.totalorder %s15, 0
    %p35 = por %p33, %p34
    %p36 = scmp.ne.s32.totalorder %s25, %s28
    %p37 = scmp.eq.s32.totalorder %s20, 1
    %p38 = por %p36, %p37
    %p39 = scmp.ne.s32.totalorder %s28, %s29
    %p40 = scmp.eq.s32.totalorder %s20, 0
    %p41 = por %p39, %p40
    %p42 = scmp.ne.s32.totalorder %s28, %s29
    %p43 = scmp.eq.s32.totalorder %s21, 1
    %p44 = por %p42, %p43
    %p46 = scmp.ne.s32.totalorder %s29, %s45
    %p47 = scmp.eq.s32.totalorder %s21, 0
    %p48 = por %p46, %p47
    %s50 = sadd.s32 %s49, 1
    %p53 = scmp.eq.s32.totalorder %s15, 1
    %p54 = scmp.ne.s32.totalorder %s49, %s51
    %p55 = scmp.eq.s32.totalorder %s15, 0
    %p56 = por %p54, %p55
    %p57 = scmp.ne.s32.totalorder %s49, %s51
    %p58 = scmp.eq.s32.totalorder %s20, 1
    %p59 = por %p57, %p58
    %p60 = scmp.ne.s32.totalorder %s51, %s52
    %p61 = scmp.eq.s32.totalorder %s20, 0
    %p62 = por %p60, %p61
    %p63 = scmp.ne.s32.totalorder %s51, %s52
    %p64 = scmp.eq.s32.totalorder %s21, 1
    %p65 = por %p63, %p64
    %p67 = scmp.ne.s32.totalorder %s52, %s66
    %p68 = scmp.eq.s32.totalorder %s21, 0
    %p69 = por %p67, %p68
    %s71 = sadd.s32 %s70, 1
    %p74 = scmp.eq.s32.totalorder %s15, 1
    %p75 = scmp.ne.s32.totalorder %s70, %s72
    %p76 = scmp.eq.s32.totalorder %s15, 0
    %p77 = por %p75, %p76
    %p78 = scmp.ne.s32.totalorder %s70, %s72
    %p79 = scmp.eq.s32.totalorder %s20, 1
    %p80 = por %p78, %p79
    %p81 = scmp.ne.s32.totalorder %s72, %s73
    %p82 = scmp.eq.s32.totalorder %s20, 0
    %p83 = por %p81, %p82
    %p84 = scmp.ne.s32.totalorder %s72, %s73
    %p85 = scmp.eq.s32.totalorder %s21, 1
    %p86 = por %p84, %p85
    %p88 = scmp.ne.s32.totalorder %s73, %s87
    %p89 = scmp.eq.s32.totalorder %s21, 0
    %p90 = por %p88, %p89
    %s92 = sadd.s32 %s91, 1
    %p95 = scmp.eq.s32.totalorder %s15, 1
    %p96 = scmp.ne.s32.totalorder %s91, %s93
    %p97 = scmp.eq.s32.totalorder %s15, 0
    %p98 = por %p96, %p97
    %p99 = scmp.ne.s32.totalorder %s91, %s93
    %p100 = scmp.eq.s32.totalorder %s20, 1
    %p101 = por %p99, %p100
    %p102 = scmp.ne.s32.totalorder %s93, %s94
    %p103 = scmp.eq.s32.totalorder %s20, 0
    %p104 = por %p102, %p103
    %p105 = scmp.ne.s32.totalorder %s93, %s94
    %p106 = scmp.eq.s32.totalorder %s21, 1
    %p107 = por %p105, %p106
    %p109 = scmp.ne.s32.totalorder %s94, %s108
    %p110 = scmp.eq.s32.totalorder %s21, 0
    %p111 = por %p109, %p110
    %s113 = sadd.s32 %s112, 1
    %p116 = scmp.eq.s32.totalorder %s15, 1
    %p117 = scmp.ne.s32.totalorder %s112, %s114
    %p118 = scmp.eq.s32.totalorder %s15, 0
    %p119 = por %p117, %p118
    %p120 = scmp.ne.s32.totalorder %s112, %s114
    %p121 = scmp.eq.s32.totalorder %s20, 1
    %p122 = por %p120, %p121
    %p123 = scmp.ne.s32.totalorder %s114, %s115
    %p124 = scmp.eq.s32.totalorder %s20, 0
    %p125 = por %p123, %p124
    %p126 = scmp.ne.s32.totalorder %s114, %s115
    %p127 = scmp.eq.s32.totalorder %s21, 1
    %p128 = por %p126, %p127
    %p130 = scmp.ne.s32.totalorder %s115, %s129
    %p131 = scmp.eq.s32.totalorder %s21, 0
    %p132 = por %p130, %p131
    %s134 = sadd.s32 %s133, 1
    %p137 = scmp.eq.s32.totalorder %s15, 1
    %p138 = scmp.ne.s32.totalorder %s133, %s135
    %p139 = scmp.eq.s32.totalorder %s15, 0
    %p140 = por %p138, %p139
    %p141 = scmp.ne.s32.totalorder %s133, %s135
    %p142 = scmp.eq.s32.totalorder %s20, 1
    %p143 = por %p141, %p142
    %p144 = scmp.ne.s32.totalorder %s135, %s136
    %p145 = scmp.eq.s32.totalorder %s20, 0
    %p146 = por %p144, %p145
    %p147 = scmp.ne.s32.totalorder %s135, %s136
    %p148 = scmp.eq.s32.totalorder %s21, 1
    %p149 = por %p147, %p148
    %p151 = scmp.ne.s32.totalorder %s136, %s150
    %p152 = scmp.eq.s32.totalorder %s21, 0
    %p153 = por %p151, %p152
    %s155 = sadd.s32 %s154, 1
    %p158 = scmp.eq.s32.totalorder %s15, 1
    %p159 = scmp.ne.s32.totalorder %s154, %s156
    %p160 = scmp.eq.s32.totalorder %s15, 0
    %p161 = por %p159, %p160
    %p162 = scmp.ne.s32.totalorder %s154, %s156
    %p163 = scmp.eq.s32.totalorder %s20, 1
    %p164 = por %p162, %p163
    %p165 = scmp.ne.s32.totalorder %s156, %s157
    %p166 = scmp.eq.s32.totalorder %s20, 0
    %p167 = por %p165, %p166
    %p168 = scmp.ne.s32.totalorder %s156, %s157
    %p169 = scmp.eq.s32.totalorder %s21, 1
    %p170 = por %p168, %p169
    %p172 = scmp.ne.s32.totalorder %s157, %s171
    %p173 = scmp.eq.s32.totalorder %s21, 0
    %p174 = por %p172, %p173
    %s176 = sadd.s32 %s175, 1
    %p179 = scmp.eq.s32.totalorder %s15, 1
    %p180 = scmp.ne.s32.totalorder %s175, %s177
    %p181 = scmp.eq.s32.totalorder %s15, 0
    %p182 = por %p180, %p181
    %p183 = scmp.ne.s32.totalorder %s175, %s177
    %p184 = scmp.eq.s32.totalorder %s20, 1
    %p185 = por %p183, %p184
    %p186 = scmp.ne.s32.totalorder %s177, %s178
    %p187 = scmp.eq.s32.totalorder %s20, 0
    %p188 = por %p186, %p187
    %p189 = scmp.ne.s32.totalorder %s177, %s178
    %p190 = scmp.eq.s32.totalorder %s21, 1
    %p191 = por %p189, %p190
    %p193 = scmp.ne.s32.totalorder %s178, %s192
    %p194 = scmp.eq.s32.totalorder %s21, 0
    %p195 = por %p193, %p194
    %s197 = sadd.s32 %s196, 1
    %p200 = scmp.eq.s32.totalorder %s15, 1
    %p201 = scmp.ne.s32.totalorder %s196, %s198
    %p202 = scmp.eq.s32.totalorder %s15, 0
    %p203 = por %p201, %p202
    %p204 = scmp.ne.s32.totalorder %s196, %s198
    %p205 = scmp.eq.s32.totalorder %s20, 1
    %p206 = por %p204, %p205
    %p207 = scmp.ne.s32.totalorder %s198, %s199
    %p208 = scmp.eq.s32.totalorder %s20, 0
    %p209 = por %p207, %p208
    %p210 = scmp.ne.s32.totalorder %s198, %s199
    %p211 = scmp.eq.s32.totalorder %s21, 1
    %p212 = por %p210, %p211
    %p214 = scmp.ne.s32.totalorder %s199, %s213
    %p215 = scmp.eq.s32.totalorder %s21, 0
    %p216 = por %p214, %p215
    %s217 = ssub.s32 %s15, %s22
    %p218 = scmp.eq.s32.totalorder %s217, 0
    %s220 = sadd.s32 %s219, 1
    %s221 = scalar_select %p218, %s219, %s220
    %p224 = pneg %p218
    %p225 = scmp.eq.s32.totalorder %s15, 1
    %p226 = por %p224, %p225
    %p227 = scmp.ne.s32.totalorder %s219, %s222
    %p228 = scmp.eq.s32.totalorder %s15, 0
    %p229 = por %p227, %p228
    %p230 = scmp.ne.s32.totalorder %s219, %s222
    %p231 = scmp.eq.s32.totalorder %s20, 1
    %p232 = por %p230, %p231
    %p233 = scmp.ne.s32.totalorder %s222, %s223
    %p234 = scmp.eq.s32.totalorder %s20, 0
    %p235 = por %p233, %p234
    %p236 = scmp.ne.s32.totalorder %s222, %s223
    %p237 = scmp.eq.s32.totalorder %s21, 1
    %p238 = por %p236, %p237
    %p240 = scmp.ne.s32.totalorder %s223, %s239
    %p241 = scmp.eq.s32.totalorder %s21, 0
    %p242 = por %p240, %p241
    %p243 = scmp.le.s32.totalorder 1, %s15
    %p244 = scmp.lt.s32.totalorder %s15, 3
    %p245 = pnand %p243, %p244
    %p246 = pneg %p245
    // Predicated region
    $region9: #{tpu_custom_call.1} parent=5 // pred_check
      _
    $region10: #{tpu_custom_call.1} parent=5 // pred_check_branch
      %248 = sbr.rel (%p245) target = $region12
    $region11: #{tpu_custom_call.1} parent=5 // pred_region
      %s249 = ssub.s32 %s15, 1
      // Predicated region
      $region13: #{tpu_custom_call.1} parent=11 // pred_check
        %p250 = pneg %p62
      $region14: #{tpu_custom_call.1} parent=11 // pred_check_branch
        %252 = sbr.rel (%p250) target = $region16
      $region15: #{tpu_custom_call.1} parent=11 // pred_region
        _
      $region16: #{tpu_custom_call.1} parent=11 // pred_fallthru
        _
      // Predicated region
      $region17: #{tpu_custom_call.1} parent=11 // pred_check
        %p253 = pneg %p83
      $region18: #{tpu_custom_call.1} parent=11 // pred_check_branch
        %255 = sbr.rel (%p253) target = $region20
      $region19: #{tpu_custom_call.1} parent=11 // pred_region
        _
      $region20: #{tpu_custom_call.1} parent=11 // pred_fallthru
        _
      // Predicated region
      $region21: #{tpu_custom_call.1} parent=11 // pred_check
        %p256 = pneg %p104
      $region22: #{tpu_custom_call.1} parent=11 // pred_check_branch
        %258 = sbr.rel (%p256) target = $region24
      $region23: #{tpu_custom_call.1} parent=11 // pred_region
        _
      $region24: #{tpu_custom_call.1} parent=11 // pred_fallthru
        _
      // Predicated region
      $region25: #{tpu_custom_call.1} parent=11 // pred_check
        %p259 = pneg %p125
      $region26: #{tpu_custom_call.1} parent=11 // pred_check_branch
        %261 = sbr.rel (%p259) target = $region28
      $region27: #{tpu_custom_call.1} parent=11 // pred_region
        _
      $region28: #{tpu_custom_call.1} parent=11 // pred_fallthru
        _
      // Predicated region
      $region29: #{tpu_custom_call.1} parent=11 // pred_check
        %p262 = pneg %p146
      $region30: #{tpu_custom_call.1} parent=11 // pred_check_branch
        %264 = sbr.rel (%p262) target = $region32
      $region31: #{tpu_custom_call.1} parent=11 // pred_region
        _
      $region32: #{tpu_custom_call.1} parent=11 // pred_fallthru
        _
      // Predicated region
      $region33: #{tpu_custom_call.1} parent=11 // pred_check
        %p265 = pneg %p167
      $region34: #{tpu_custom_call.1} parent=11 // pred_check_branch
        %267 = sbr.rel (%p265) target = $region36
      $region35: #{tpu_custom_call.1} parent=11 // pred_region
        _
      $region36: #{tpu_custom_call.1} parent=11 // pred_fallthru
        _
      // Predicated region
      $region37: #{tpu_custom_call.1} parent=11 // pred_check
        %p268 = pneg %p188
      $region38: #{tpu_custom_call.1} parent=11 // pred_check_branch
        %270 = sbr.rel (%p268) target = $region40
      $region39: #{tpu_custom_call.1} parent=11 // pred_region
        _
      $region40: #{tpu_custom_call.1} parent=11 // pred_fallthru
        _
      // Predicated region
      $region41: #{tpu_custom_call.1} parent=11 // pred_check
        %p271 = pneg %p209
      $region42: #{tpu_custom_call.1} parent=11 // pred_check_branch
        %273 = sbr.rel (%p271) target = $region44
      $region43: #{tpu_custom_call.1} parent=11 // pred_region
        _
      $region44: #{tpu_custom_call.1} parent=11 // pred_fallthru
        _
    $region12: #{tpu_custom_call.1} parent=5 // pred_fallthru
      _
    %p274 = scmp.lt.s32.totalorder %s15, 2
    // Predicated region
    $region45: #{tpu_custom_call.1} parent=5 // pred_check
      %p275 = pneg %p274
    $region46: #{tpu_custom_call.1} parent=5 // pred_check_branch
      %277 = sbr.rel (%p275) target = $region48
    $region47: #{tpu_custom_call.1} parent=5 // pred_region
      // Predicated region
      $region49: #{tpu_custom_call.1} parent=47 // pred_check
        %p278 = pneg %p35
      $region50: #{tpu_custom_call.1} parent=47 // pred_check_branch
        %280 = sbr.rel (%p278) target = $region52
      $region51: #{tpu_custom_call.1} parent=47 // pred_region
        %s281 = smul.u32 16, %s15
        %p282 = scmp.lt.s32.totalorder %s281, 31
        %s283 = scalar_select %p282, %s281, 31
        %s284 = smul.addr %s283, 8
        %s285 = scalar_lea.vmem %s0, %s284
        %s286 = smul.u32 16, %s15
      $region52: #{tpu_custom_call.1} parent=47 // pred_fallthru
        _
    $region48: #{tpu_custom_call.1} parent=5 // pred_fallthru
      _
    %p287 = scmp.le.s32.totalorder 1, %s15
    %p288 = scmp.lt.s32.totalorder %s15, 3
    %p289 = pnand %p287, %p288
    %p290 = pneg %p289
    // Predicated region
    $region53: #{tpu_custom_call.1} parent=5 // pred_check
      _
    $region54: #{tpu_custom_call.1} parent=5 // pred_check_branch
      %292 = sbr.rel (%p289) target = $region56
    $region55: #{tpu_custom_call.1} parent=5 // pred_region
      %s293 = ssub.s32 %s15, 1
      %s294 = smul.u32 16, %s20
      %p295 = scmp.lt.s32.totalorder %s294, 31
      %s296 = scalar_select %p295, %s294, 31
      %s297 = smul.addr %s296, 8
      %s298 = scalar_lea.vmem %s0, %s297
      %p299 = pneg %p41
      %p300 = pneg %p38
      %p301 = pneg %p62
      %p302 = pneg %p59
      %p303 = pneg %p83
      %p304 = pneg %p80
      %p305 = pneg %p104
      %p306 = pneg %p101
      %p307 = pneg %p125
      %p308 = pneg %p122
      %p309 = pneg %p146
      %p310 = pneg %p143
      %p311 = pneg %p167
      %p312 = pneg %p164
      %p313 = pneg %p188
      %p314 = pneg %p185
      %p315 = pneg %p209
      %p316 = pneg %p206
      %p317 = pneg %p235
      %p318 = pneg %p232
      %s319 = smul.u32 16, %s20
      %p320 = scmp.lt.s32.totalorder %s319, 31
      %s321 = scalar_select %p320, %s319, 31
      %s322 = smul.addr %s321, 8
      %s323 = scalar_lea.vmem %s9, %s322
      %s324 = smul.u32 16, %s20
      %p325 = scmp.lt.s32.totalorder %s324, 31
      %s326 = scalar_select %p325, %s324, 31
      %s327 = smul.addr %s326, 8
      %s328 = scalar_lea.vmem %s0, %s327
      %s329 = smul.u32 16, %s20
      %s330 = smul.u32 16, %s20
      %p331 = scmp.lt.s32.totalorder %s330, 31
      %s332 = scalar_select %p331, %s330, 31
      %s333 = smul.addr %s332, 8
      %s334 = scalar_lea.vmem %s9, %s333
      %s335 = smul.u32 16, %s20
      %v336 = vld [vmem:[%s328] sm:$0xff]
      %v337 = vld [vmem:[%s328 + $0x8] sm:$0xff]
      %v338 = vld [vmem:[%s328 + $0x10] sm:$0xff]
      %v339 = vld [vmem:[%s328 + $0x18] sm:$0xff]
      %v340 = vld [vmem:[%s328 + $0x20] sm:$0xff]
      %v341 = vld [vmem:[%s328 + $0x28] sm:$0xff]
      %v342 = vld [vmem:[%s328 + $0x30] sm:$0xff]
      %v343 = vld [vmem:[%s328 + $0x38] sm:$0xff]
      %v344 = vld [vmem:[%s328 + $0x40] sm:$0xff]
      %v345 = vld [vmem:[%s328 + $0x48] sm:$0xff]
      %v346 = vld [vmem:[%s328 + $0x50] sm:$0xff]
      %v347 = vld [vmem:[%s328 + $0x58] sm:$0xff]
      %v348 = vld [vmem:[%s328 + $0x60] sm:$0xff]
      %v349 = vld [vmem:[%s328 + $0x68] sm:$0xff]
      %v350 = vld [vmem:[%s328 + $0x70] sm:$0xff]
      %v351 = vld [vmem:[%s328 + $0x78] sm:$0xff]
      %v352 = vld [vmem:[%s1] sm:$0xff]
      %v353 = vld [vmem:[%s1 + $0x8] sm:$0xff]
      %v354 = vld [vmem:[%s1 + $0x10] sm:$0xf]
      %v355 = vld [vmem:[%s2] sm:$0x1]
      %v357 = vlaneseq
      %v358 = vshrl.u32 %v357, 7
      %v359 = vsub.s32 0, %v358
      %v360 = vrot.slane %v355, %v359
      %vm362 = vcmask 351232
      %v364 = vsel %vm362, %v336, 0
      %v367 = vsel %vm362, %v337, 0
      %v370 = vsel %vm362, %v338, 0
      %v373 = vsel %vm362, %v339, 0
      %v376 = vsel %vm362, %v340, 0
      %v379 = vsel %vm362, %v341, 0
      %v382 = vsel %vm362, %v342, 0
      %v385 = vsel %vm362, %v343, 0
      %v388 = vsel %vm362, %v344, 0
      %v391 = vsel %vm362, %v345, 0
      %v394 = vsel %vm362, %v346, 0
      %v397 = vsel %vm362, %v347, 0
      %v400 = vsel %vm362, %v348, 0
      %v403 = vsel %vm362, %v349, 0
      %v406 = vsel %vm362, %v350, 0
      %v409 = vsel %vm362, %v351, 0
      %v412 = vsel %vm362, %v352, 0
      %v415 = vsel %vm362, %v353, 0
      %v418 = vsel %vm362, %v354, 0
      %420 = vmatprep.subr.mxu0 0.0
      %421 = vmatpush1.xpose.msra.mxu0 0.0
      %422 = vmatprep.subr.mxu0 0.0
      %423 = vmatpush1.xpose.msra.mxu0 0.0
      %424 = vmatprep.subr.mxu0 0.0
      %425 = vmatpush1.xpose.msra.mxu0 0.0
      %426 = vmatprep.subr.mxu0 0.0
      %427 = vmatpush1.xpose.msra.mxu0 0.0
      %428 = vmatprep.subr.mxu0 0.0
      %429 = vmatpush1.xpose.msra.mxu0 0.0
      %430 = vmatprep.subr.mxu0 0.0
      %431 = vmatpush1.xpose.msra.mxu0 0.0
      %432 = vmatprep.subr.mxu0 0.0
      %433 = vmatpush1.xpose.msra.mxu0 0.0
      %434 = vmatprep.subr.mxu0 0.0
      %435 = vmatpush1.xpose.msra.mxu0 0.0
      %436 = vmatprep.subr.mxu0 0.0
      %437 = vmatpush1.xpose.msra.mxu0 0.0
      %438 = vmatprep.subr.mxu0 0.0
      %439 = vmatpush1.xpose.msra.mxu0 0.0
      %440 = vmatprep.subr.mxu0 0.0
      %441 = vmatpush1.xpose.msra.mxu0 0.0
      %442 = vmatprep.subr.mxu0 0.0
      %443 = vmatpush1.xpose.msra.mxu0 0.0
      %444 = vmatprep.subr.mxu0 0.0
      %445 = vmatpush1.xpose.msra.mxu0 0.0
      %446 = vmatprep.subr.mxu0 0.0
      %447 = vmatpush1.xpose.msra.mxu0 %v418
      %448 = vmatprep.subr.mxu0 0.0
      %449 = vmatpush1.xpose.msra.mxu0 %v415
      %450 = vmatprep.subr.mxu0 0.0
      %451 = vmatpush1.xpose.msra.mxu0 %v412
      %452 = vmatprep.subr.mxu0 0.0
      %453 = vmatpush2.xpose.msra.mxu0 0.0
      %454 = vmatprep.subr.mxu0 0.0
      %455 = vmatpush2.xpose.msra.mxu0 0.0
      %456 = vmatprep.subr.mxu0 0.0
      %457 = vmatpush2.xpose.msra.mxu0 0.0
      %458 = vmatprep.subr.mxu0 0.0
      %459 = vmatpush2.xpose.msra.mxu0 0.0
      %460 = vmatprep.subr.mxu0 0.0
      %461 = vmatpush2.xpose.msra.mxu0 0.0
      %462 = vmatprep.subr.mxu0 0.0
      %463 = vmatpush2.xpose.msra.mxu0 0.0
      %464 = vmatprep.subr.mxu0 0.0
      %465 = vmatpush2.xpose.msra.mxu0 0.0
      %466 = vmatprep.subr.mxu0 0.0
      %467 = vmatpush2.xpose.msra.mxu0 0.0
      %468 = vmatprep.subr.mxu0 0.0
      %469 = vmatpush2.xpose.msra.mxu0 0.0
      %470 = vmatprep.subr.mxu0 0.0
      %471 = vmatpush2.xpose.msra.mxu0 0.0
      %472 = vmatprep.subr.mxu0 0.0
      %473 = vmatpush2.xpose.msra.mxu0 0.0
      %474 = vmatprep.subr.mxu0 0.0
      %475 = vmatpush2.xpose.msra.mxu0 0.0
      %476 = vmatprep.subr.mxu0 0.0
      %477 = vmatpush2.xpose.msra.mxu0 0.0
      %478 = vmatprep.subr.mxu0 0.0
      %479 = vmatpush2.xpose.msra.mxu0 0.0
      %480 = vmatprep.subr.mxu0 0.0
      %481 = vmatpush2.xpose.msra.mxu0 0.0
      %482 = vmatprep.subr.mxu0 0.0
      %483 = vmatpush2.xpose.msra.mxu0 0.0
      %484 = vmatprep.mubr.f32.mxu0 0.0
      %485 = vmatmul.mubr.f32.gmra.mxu0 %v364
      %v486 = vpop.f32.mrf.mxu0
      %v487 = vadd.f32 %v360, %v486
      %v488 = vpop.f32.mrf.mxu0
      %489 = vmatprep.mubr.f32.mxu0 0.0
      %490 = vmatmul.mubr.f32.gmra.mxu0 %v367
      %v491 = vpop.f32.mrf.mxu0
      %v492 = vadd.f32 %v360, %v491
      %v493 = vpop.f32.mrf.mxu0
      %494 = vmatprep.mubr.f32.mxu0 0.0
      %495 = vmatmul.mubr.f32.gmra.mxu0 %v370
      %v496 = vpop.f32.mrf.mxu0
      %v497 = vadd.f32 %v360, %v496
      %v498 = vpop.f32.mrf.mxu0
      %499 = vmatprep.mubr.f32.mxu0 0.0
      %500 = vmatmul.mubr.f32.gmra.mxu0 %v373
      %v501 = vpop.f32.mrf.mxu0
      %v502 = vadd.f32 %v360, %v501
      %v503 = vpop.f32.mrf.mxu0
      %504 = vmatprep.mubr.f32.mxu0 0.0
      %505 = vmatmul.mubr.f32.gmra.mxu0 %v376
      %v506 = vpop.f32.mrf.mxu0
      %v507 = vadd.f32 %v360, %v506
      %v508 = vpop.f32.mrf.mxu0
      %509 = vmatprep.mubr.f32.mxu0 0.0
      %510 = vmatmul.mubr.f32.gmra.mxu0 %v379
      %v511 = vpop.f32.mrf.mxu0
      %v512 = vadd.f32 %v360, %v511
      %v513 = vpop.f32.mrf.mxu0
      %514 = vmatprep.mubr.f32.mxu0 0.0
      %515 = vmatmul.mubr.f32.gmra.mxu0 %v382
      %v516 = vpop.f32.mrf.mxu0
      %v517 = vadd.f32 %v360, %v516
      %v518 = vpop.f32.mrf.mxu0
      %519 = vmatprep.mubr.f32.mxu0 0.0
      %520 = vmatmul.mubr.f32.gmra.mxu0 %v385
      %v521 = vpop.f32.mrf.mxu0
      %v522 = vadd.f32 %v360, %v521
      %v523 = vpop.f32.mrf.mxu0
      %524 = vmatprep.mubr.f32.mxu0 0.0
      %525 = vmatmul.mubr.f32.gmra.mxu0 %v388
      %v526 = vpop.f32.mrf.mxu0
      %v527 = vadd.f32 %v360, %v526
      %v528 = vpop.f32.mrf.mxu0
      %529 = vmatprep.mubr.f32.mxu0 0.0
      %530 = vmatmul.mubr.f32.gmra.mxu0 %v391
      %v531 = vpop.f32.mrf.mxu0
      %v532 = vadd.f32 %v360, %v531
      %v533 = vpop.f32.mrf.mxu0
      %534 = vmatprep.mubr.f32.mxu0 0.0
      %535 = vmatmul.mubr.f32.gmra.mxu0 %v394
      %v536 = vpop.f32.mrf.mxu0
      %v537 = vadd.f32 %v360, %v536
      %v538 = vpop.f32.mrf.mxu0
      %539 = vmatprep.mubr.f32.mxu0 0.0
      %540 = vmatmul.mubr.f32.gmra.mxu0 %v397
      %v541 = vpop.f32.mrf.mxu0
      %v542 = vadd.f32 %v360, %v541
      %v543 = vpop.f32.mrf.mxu0
      %544 = vmatprep.mubr.f32.mxu0 0.0
      %545 = vmatmul.mubr.f32.gmra.mxu0 %v400
      %v546 = vpop.f32.mrf.mxu0
      %v547 = vadd.f32 %v360, %v546
      %v548 = vpop.f32.mrf.mxu0
      %549 = vmatprep.mubr.f32.mxu0 0.0
      %550 = vmatmul.mubr.f32.gmra.mxu0 %v403
      %v551 = vpop.f32.mrf.mxu0
      %v552 = vadd.f32 %v360, %v551
      %v553 = vpop.f32.mrf.mxu0
      %554 = vmatprep.mubr.f32.mxu0 0.0
      %555 = vmatmul.mubr.f32.gmra.mxu0 %v406
      %v556 = vpop.f32.mrf.mxu0
      %v557 = vadd.f32 %v360, %v556
      %v558 = vpop.f32.mrf.mxu0
      %559 = vmatprep.mubr.f32.mxu0 0.0
      %560 = vmatmul.mubr.f32.gmra.mxu0 %v409
      %v561 = vpop.f32.mrf.mxu0
      %v562 = vadd.f32 %v360, %v561
      %v563 = vpop.f32.mrf.mxu0
      %564 = vdwg.mxu0
      %v565 = vmax.f32 %v487, 0.0
      %v566 = vmax.f32 %v492, 0.0
      %v567 = vmax.f32 %v497, 0.0
      %v568 = vmax.f32 %v502, 0.0
      %v569 = vmax.f32 %v507, 0.0
      %v570 = vmax.f32 %v512, 0.0
      %v571 = vmax.f32 %v517, 0.0
      %v572 = vmax.f32 %v522, 0.0
      %v573 = vmax.f32 %v527, 0.0
      %v574 = vmax.f32 %v532, 0.0
      %v575 = vmax.f32 %v537, 0.0
      %v576 = vmax.f32 %v542, 0.0
      %v577 = vmax.f32 %v547, 0.0
      %v578 = vmax.f32 %v552, 0.0
      %v579 = vmax.f32 %v557, 0.0
      %v580 = vmax.f32 %v562, 0.0
      %v581 = vld [vmem:[%s3] sm:$0xff]
      %v582 = vld [vmem:[%s3 + $0x8] sm:$0x3]
      %v583 = vld [vmem:[%s4] sm:$0x1]
      %v585 = vlaneseq
      %v586 = vshrl.u32 %v585, 7
      %v587 = vsub.s32 0, %v586
      %v588 = vrot.slane %v583, %v587
      %vm590 = vcmask 162816
      %v592 = vsel %vm590, %v565, 0
      %v595 = vsel %vm590, %v566, 0
      %v598 = vsel %vm590, %v567, 0
      %v601 = vsel %vm590, %v568, 0
      %v604 = vsel %vm590, %v569, 0
      %v607 = vsel %vm590, %v570, 0
      %v610 = vsel %vm590, %v571, 0
      %v613 = vsel %vm590, %v572, 0
      %v616 = vsel %vm590, %v573, 0
      %v619 = vsel %vm590, %v574, 0
      %v622 = vsel %vm590, %v575, 0
      %v625 = vsel %vm590, %v576, 0
      %v628 = vsel %vm590, %v577, 0
      %v631 = vsel %vm590, %v578, 0
      %v634 = vsel %vm590, %v579, 0
      %v637 = vsel %vm590, %v580, 0
      %v640 = vsel %vm590, %v581, 0
      %v643 = vsel %vm590, %v582, 0
      %645 = vmatprep.subr.mxu0 0.0
      %646 = vmatpush1.xpose.msra.mxu0 0.0
      %647 = vmatprep.subr.mxu0 0.0
      %648 = vmatpush1.xpose.msra.mxu0 0.0
      %649 = vmatprep.subr.mxu0 0.0
      %650 = vmatpush1.xpose.msra.mxu0 0.0
      %651 = vmatprep.subr.mxu0 0.0
      %652 = vmatpush1.xpose.msra.mxu0 0.0
      %653 = vmatprep.subr.mxu0 0.0
      %654 = vmatpush1.xpose.msra.mxu0 0.0
      %655 = vmatprep.subr.mxu0 0.0
      %656 = vmatpush1.xpose.msra.mxu0 0.0
      %657 = vmatprep.subr.mxu0 0.0
      %658 = vmatpush1.xpose.msra.mxu0 0.0
      %659 = vmatprep.subr.mxu0 0.0
      %660 = vmatpush1.xpose.msra.mxu0 0.0
      %661 = vmatprep.subr.mxu0 0.0
      %662 = vmatpush1.xpose.msra.mxu0 0.0
      %663 = vmatprep.subr.mxu0 0.0
      %664 = vmatpush1.xpose.msra.mxu0 0.0
      %665 = vmatprep.subr.mxu0 0.0
      %666 = vmatpush1.xpose.msra.mxu0 0.0
      %667 = vmatprep.subr.mxu0 0.0
      %668 = vmatpush1.xpose.msra.mxu0 0.0
      %669 = vmatprep.subr.mxu0 0.0
      %670 = vmatpush1.xpose.msra.mxu0 0.0
      %671 = vmatprep.subr.mxu0 0.0
      %672 = vmatpush1.xpose.msra.mxu0 0.0
      %673 = vmatprep.subr.mxu0 0.0
      %674 = vmatpush1.xpose.msra.mxu0 %v643
      %675 = vmatprep.subr.mxu0 0.0
      %676 = vmatpush1.xpose.msra.mxu0 %v640
      %677 = vmatprep.subr.mxu0 0.0
      %678 = vmatpush2.xpose.msra.mxu0 0.0
      %679 = vmatprep.subr.mxu0 0.0
      %680 = vmatpush2.xpose.msra.mxu0 0.0
      %681 = vmatprep.subr.mxu0 0.0
      %682 = vmatpush2.xpose.msra.mxu0 0.0
      %683 = vmatprep.subr.mxu0 0.0
      %684 = vmatpush2.xpose.msra.mxu0 0.0
      %685 = vmatprep.subr.mxu0 0.0
      %686 = vmatpush2.xpose.msra.mxu0 0.0
      %687 = vmatprep.subr.mxu0 0.0
      %688 = vmatpush2.xpose.msra.mxu0 0.0
      %689 = vmatprep.subr.mxu0 0.0
      %690 = vmatpush2.xpose.msra.mxu0 0.0
      %691 = vmatprep.subr.mxu0 0.0
      %692 = vmatpush2.xpose.msra.mxu0 0.0
      %693 = vmatprep.subr.mxu0 0.0
      %694 = vmatpush2.xpose.msra.mxu0 0.0
      %695 = vmatprep.subr.mxu0 0.0
      %696 = vmatpush2.xpose.msra.mxu0 0.0
      %697 = vmatprep.subr.mxu0 0.0
      %698 = vmatpush2.xpose.msra.mxu0 0.0
      %699 = vmatprep.subr.mxu0 0.0
      %700 = vmatpush2.xpose.msra.mxu0 0.0
      %701 = vmatprep.subr.mxu0 0.0
      %702 = vmatpush2.xpose.msra.mxu0 0.0
      %703 = vmatprep.subr.mxu0 0.0
      %704 = vmatpush2.xpose.msra.mxu0 0.0
      %705 = vmatprep.subr.mxu0 0.0
      %706 = vmatpush2.xpose.msra.mxu0 0.0
      %707 = vmatprep.subr.mxu0 0.0
      %708 = vmatpush2.xpose.msra.mxu0 0.0
      %709 = vmatprep.mubr.f32.mxu0 0.0
      %710 = vmatmul.mubr.f32.gmra.mxu0 %v592
      %v711 = vpop.f32.mrf.mxu0
      %v712 = vadd.f32 %v588, %v711
      %v713 = vpop.f32.mrf.mxu0
      %714 = vmatprep.mubr.f32.mxu0 0.0
      %715 = vmatmul.mubr.f32.gmra.mxu0 %v595
      %v716 = vpop.f32.mrf.mxu0
      %v717 = vadd.f32 %v588, %v716
      %v718 = vpop.f32.mrf.mxu0
      %719 = vmatprep.mubr.f32.mxu0 0.0
      %720 = vmatmul.mubr.f32.gmra.mxu0 %v598
      %v721 = vpop.f32.mrf.mxu0
      %v722 = vadd.f32 %v588, %v721
      %v723 = vpop.f32.mrf.mxu0
      %724 = vmatprep.mubr.f32.mxu0 0.0
      %725 = vmatmul.mubr.f32.gmra.mxu0 %v601
      %v726 = vpop.f32.mrf.mxu0
      %v727 = vadd.f32 %v588, %v726
      %v728 = vpop.f32.mrf.mxu0
      %729 = vmatprep.mubr.f32.mxu0 0.0
      %730 = vmatmul.mubr.f32.gmra.mxu0 %v604
      %v731 = vpop.f32.mrf.mxu0
      %v732 = vadd.f32 %v588, %v731
      %v733 = vpop.f32.mrf.mxu0
      %734 = vmatprep.mubr.f32.mxu0 0.0
      %735 = vmatmul.mubr.f32.gmra.mxu0 %v607
      %v736 = vpop.f32.mrf.mxu0
      %v737 = vadd.f32 %v588, %v736
      %v738 = vpop.f32.mrf.mxu0
      %739 = vmatprep.mubr.f32.mxu0 0.0
      %740 = vmatmul.mubr.f32.gmra.mxu0 %v610
      %v741 = vpop.f32.mrf.mxu0
      %v742 = vadd.f32 %v588, %v741
      %v743 = vpop.f32.mrf.mxu0
      %744 = vmatprep.mubr.f32.mxu0 0.0
      %745 = vmatmul.mubr.f32.gmra.mxu0 %v613
      %v746 = vpop.f32.mrf.mxu0
      %v747 = vadd.f32 %v588, %v746
      %v748 = vpop.f32.mrf.mxu0
      %749 = vmatprep.mubr.f32.mxu0 0.0
      %750 = vmatmul.mubr.f32.gmra.mxu0 %v616
      %v751 = vpop.f32.mrf.mxu0
      %v752 = vadd.f32 %v588, %v751
      %v753 = vpop.f32.mrf.mxu0
      %754 = vmatprep.mubr.f32.mxu0 0.0
      %755 = vmatmul.mubr.f32.gmra.mxu0 %v619
      %v756 = vpop.f32.mrf.mxu0
      %v757 = vadd.f32 %v588, %v756
      %v758 = vpop.f32.mrf.mxu0
      %759 = vmatprep.mubr.f32.mxu0 0.0
      %760 = vmatmul.mubr.f32.gmra.mxu0 %v622
      %v761 = vpop.f32.mrf.mxu0
      %v762 = vadd.f32 %v588, %v761
      %v763 = vpop.f32.mrf.mxu0
      %764 = vmatprep.mubr.f32.mxu0 0.0
      %765 = vmatmul.mubr.f32.gmra.mxu0 %v625
      %v766 = vpop.f32.mrf.mxu0
      %v767 = vadd.f32 %v588, %v766
      %v768 = vpop.f32.mrf.mxu0
      %769 = vmatprep.mubr.f32.mxu0 0.0
      %770 = vmatmul.mubr.f32.gmra.mxu0 %v628
      %v771 = vpop.f32.mrf.mxu0
      %v772 = vadd.f32 %v588, %v771
      %v773 = vpop.f32.mrf.mxu0
      %774 = vmatprep.mubr.f32.mxu0 0.0
      %775 = vmatmul.mubr.f32.gmra.mxu0 %v631
      %v776 = vpop.f32.mrf.mxu0
      %v777 = vadd.f32 %v588, %v776
      %v778 = vpop.f32.mrf.mxu0
      %779 = vmatprep.mubr.f32.mxu0 0.0
      %780 = vmatmul.mubr.f32.gmra.mxu0 %v634
      %v781 = vpop.f32.mrf.mxu0
      %v782 = vadd.f32 %v588, %v781
      %v783 = vpop.f32.mrf.mxu0
      %784 = vmatprep.mubr.f32.mxu0 0.0
      %785 = vmatmul.mubr.f32.gmra.mxu0 %v637
      %v786 = vpop.f32.mrf.mxu0
      %v787 = vadd.f32 %v588, %v786
      %v788 = vpop.f32.mrf.mxu0
      %789 = vdwg.mxu0
      %v790 = vmax.f32 %v712, 0.0
      %v791 = vmax.f32 %v717, 0.0
      %v792 = vmax.f32 %v722, 0.0
      %v793 = vmax.f32 %v727, 0.0
      %v794 = vmax.f32 %v732, 0.0
      %v795 = vmax.f32 %v737, 0.0
      %v796 = vmax.f32 %v742, 0.0
      %v797 = vmax.f32 %v747, 0.0
      %v798 = vmax.f32 %v752, 0.0
      %v799 = vmax.f32 %v757, 0.0
      %v800 = vmax.f32 %v762, 0.0
      %v801 = vmax.f32 %v767, 0.0
      %v802 = vmax.f32 %v772, 0.0
      %v803 = vmax.f32 %v777, 0.0
      %v804 = vmax.f32 %v782, 0.0
      %v805 = vmax.f32 %v787, 0.0
      %v806 = vld [vmem:[%s5] sm:$0xff]
      %v807 = vld [vmem:[%s5 + $0x8] sm:$0xff]
      %v808 = vld [vmem:[%s5 + $0x10] sm:$0xf]
      %v809 = vld [vmem:[%s6] sm:$0x1]
      %v811 = vlaneseq
      %v812 = vshrl.u32 %v811, 7
      %v813 = vsub.s32 0, %v812
      %v814 = vrot.slane %v809, %v813
      %vm816 = vcmask 80896
      %v818 = vsel %vm816, %v790, 0
      %v821 = vsel %vm816, %v791, 0
      %v824 = vsel %vm816, %v792, 0
      %v827 = vsel %vm816, %v793, 0
      %v830 = vsel %vm816, %v794, 0
      %v833 = vsel %vm816, %v795, 0
      %v836 = vsel %vm816, %v796, 0
      %v839 = vsel %vm816, %v797, 0
      %v842 = vsel %vm816, %v798, 0
      %v845 = vsel %vm816, %v799, 0
      %v848 = vsel %vm816, %v800, 0
      %v851 = vsel %vm816, %v801, 0
      %v854 = vsel %vm816, %v802, 0
      %v857 = vsel %vm816, %v803, 0
      %v860 = vsel %vm816, %v804, 0
      %v863 = vsel %vm816, %v805, 0
      %v866 = vsel %vm816, %v806, 0
      %v869 = vsel %vm816, %v807, 0
      %v872 = vsel %vm816, %v808, 0
      %874 = vmatprep.subr.mxu0 0.0
      %875 = vmatpush1.xpose.msra.mxu0 0.0
      %876 = vmatprep.subr.mxu0 0.0
      %877 = vmatpush1.xpose.msra.mxu0 0.0
      %878 = vmatprep.subr.mxu0 0.0
      %879 = vmatpush1.xpose.msra.mxu0 0.0
      %880 = vmatprep.subr.mxu0 0.0
      %881 = vmatpush1.xpose.msra.mxu0 0.0
      %882 = vmatprep.subr.mxu0 0.0
      %883 = vmatpush1.xpose.msra.mxu0 0.0
      %884 = vmatprep.subr.mxu0 0.0
      %885 = vmatpush1.xpose.msra.mxu0 0.0
      %886 = vmatprep.subr.mxu0 0.0
      %887 = vmatpush1.xpose.msra.mxu0 0.0
      %888 = vmatprep.subr.mxu0 0.0
      %889 = vmatpush1.xpose.msra.mxu0 0.0
      %890 = vmatprep.subr.mxu0 0.0
      %891 = vmatpush1.xpose.msra.mxu0 0.0
      %892 = vmatprep.subr.mxu0 0.0
      %893 = vmatpush1.xpose.msra.mxu0 0.0
      %894 = vmatprep.subr.mxu0 0.0
      %895 = vmatpush1.xpose.msra.mxu0 0.0
      %896 = vmatprep.subr.mxu0 0.0
      %897 = vmatpush1.xpose.msra.mxu0 0.0
      %898 = vmatprep.subr.mxu0 0.0
      %899 = vmatpush1.xpose.msra.mxu0 0.0
      %900 = vmatprep.subr.mxu0 0.0
      %901 = vmatpush1.xpose.msra.mxu0 %v872
      %902 = vmatprep.subr.mxu0 0.0
      %903 = vmatpush1.xpose.msra.mxu0 %v869
      %904 = vmatprep.subr.mxu0 0.0
      %905 = vmatpush1.xpose.msra.mxu0 %v866
      %906 = vmatprep.subr.mxu0 0.0
      %907 = vmatpush2.xpose.msra.mxu0 0.0
      %908 = vmatprep.subr.mxu0 0.0
      %909 = vmatpush2.xpose.msra.mxu0 0.0
      %910 = vmatprep.subr.mxu0 0.0
      %911 = vmatpush2.xpose.msra.mxu0 0.0
      %912 = vmatprep.subr.mxu0 0.0
      %913 = vmatpush2.xpose.msra.mxu0 0.0
      %914 = vmatprep.subr.mxu0 0.0
      %915 = vmatpush2.xpose.msra.mxu0 0.0
      %916 = vmatprep.subr.mxu0 0.0
      %917 = vmatpush2.xpose.msra.mxu0 0.0
      %918 = vmatprep.subr.mxu0 0.0
      %919 = vmatpush2.xpose.msra.mxu0 0.0
      %920 = vmatprep.subr.mxu0 0.0
      %921 = vmatpush2.xpose.msra.mxu0 0.0
      %922 = vmatprep.subr.mxu0 0.0
      %923 = vmatpush2.xpose.msra.mxu0 0.0
      %924 = vmatprep.subr.mxu0 0.0
      %925 = vmatpush2.xpose.msra.mxu0 0.0
      %926 = vmatprep.subr.mxu0 0.0
      %927 = vmatpush2.xpose.msra.mxu0 0.0
      %928 = vmatprep.subr.mxu0 0.0
      %929 = vmatpush2.xpose.msra.mxu0 0.0
      %930 = vmatprep.subr.mxu0 0.0
      %931 = vmatpush2.xpose.msra.mxu0 0.0
      %932 = vmatprep.subr.mxu0 0.0
      %933 = vmatpush2.xpose.msra.mxu0 0.0
      %934 = vmatprep.subr.mxu0 0.0
      %935 = vmatpush2.xpose.msra.mxu0 0.0
      %936 = vmatprep.subr.mxu0 0.0
      %937 = vmatpush2.xpose.msra.mxu0 0.0
      %938 = vmatprep.mubr.f32.mxu0 0.0
      %939 = vmatmul.mubr.f32.gmra.mxu0 %v818
      %v940 = vpop.f32.mrf.mxu0
      %v941 = vadd.f32 %v814, %v940
      %v942 = vpop.f32.mrf.mxu0
      %943 = vmatprep.mubr.f32.mxu0 0.0
      %944 = vmatmul.mubr.f32.gmra.mxu0 %v821
      %v945 = vpop.f32.mrf.mxu0
      %v946 = vadd.f32 %v814, %v945
      %v947 = vpop.f32.mrf.mxu0
      %948 = vmatprep.mubr.f32.mxu0 0.0
      %949 = vmatmul.mubr.f32.gmra.mxu0 %v824
      %v950 = vpop.f32.mrf.mxu0
      %v951 = vadd.f32 %v814, %v950
      %v952 = vpop.f32.mrf.mxu0
      %953 = vmatprep.mubr.f32.mxu0 0.0
      %954 = vmatmul.mubr.f32.gmra.mxu0 %v827
      %v955 = vpop.f32.mrf.mxu0
      %v956 = vadd.f32 %v814, %v955
      %v957 = vpop.f32.mrf.mxu0
      %958 = vmatprep.mubr.f32.mxu0 0.0
      %959 = vmatmul.mubr.f32.gmra.mxu0 %v830
      %v960 = vpop.f32.mrf.mxu0
      %v961 = vadd.f32 %v814, %v960
      %v962 = vpop.f32.mrf.mxu0
      %963 = vmatprep.mubr.f32.mxu0 0.0
      %964 = vmatmul.mubr.f32.gmra.mxu0 %v833
      %v965 = vpop.f32.mrf.mxu0
      %v966 = vadd.f32 %v814, %v965
      %v967 = vpop.f32.mrf.mxu0
      %968 = vmatprep.mubr.f32.mxu0 0.0
      %969 = vmatmul.mubr.f32.gmra.mxu0 %v836
      %v970 = vpop.f32.mrf.mxu0
      %v971 = vadd.f32 %v814, %v970
      %v972 = vpop.f32.mrf.mxu0
      %973 = vmatprep.mubr.f32.mxu0 0.0
      %974 = vmatmul.mubr.f32.gmra.mxu0 %v839
      %v975 = vpop.f32.mrf.mxu0
      %v976 = vadd.f32 %v814, %v975
      %v977 = vpop.f32.mrf.mxu0
      %978 = vmatprep.mubr.f32.mxu0 0.0
      %979 = vmatmul.mubr.f32.gmra.mxu0 %v842
      %v980 = vpop.f32.mrf.mxu0
      %v981 = vadd.f32 %v814, %v980
      %v982 = vpop.f32.mrf.mxu0
      %983 = vmatprep.mubr.f32.mxu0 0.0
      %984 = vmatmul.mubr.f32.gmra.mxu0 %v845
      %v985 = vpop.f32.mrf.mxu0
      %v986 = vadd.f32 %v814, %v985
      %v987 = vpop.f32.mrf.mxu0
      %988 = vmatprep.mubr.f32.mxu0 0.0
      %989 = vmatmul.mubr.f32.gmra.mxu0 %v848
      %v990 = vpop.f32.mrf.mxu0
      %v991 = vadd.f32 %v814, %v990
      %v992 = vpop.f32.mrf.mxu0
      %993 = vmatprep.mubr.f32.mxu0 0.0
      %994 = vmatmul.mubr.f32.gmra.mxu0 %v851
      %v995 = vpop.f32.mrf.mxu0
      %v996 = vadd.f32 %v814, %v995
      %v997 = vpop.f32.mrf.mxu0
      %998 = vmatprep.mubr.f32.mxu0 0.0
      %999 = vmatmul.mubr.f32.gmra.mxu0 %v854
      %v1000 = vpop.f32.mrf.mxu0
      %v1001 = vadd.f32 %v814, %v1000
      %v1002 = vpop.f32.mrf.mxu0
      %1003 = vmatprep.mubr.f32.mxu0 0.0
      %1004 = vmatmul.mubr.f32.gmra.mxu0 %v857
      %v1005 = vpop.f32.mrf.mxu0
      %v1006 = vadd.f32 %v814, %v1005
      %v1007 = vpop.f32.mrf.mxu0
      %1008 = vmatprep.mubr.f32.mxu0 0.0
      %1009 = vmatmul.mubr.f32.gmra.mxu0 %v860
      %v1010 = vpop.f32.mrf.mxu0
      %v1011 = vadd.f32 %v814, %v1010
      %v1012 = vpop.f32.mrf.mxu0
      %1013 = vmatprep.mubr.f32.mxu0 0.0
      %1014 = vmatmul.mubr.f32.gmra.mxu0 %v863
      %v1015 = vpop.f32.mrf.mxu0
      %v1016 = vadd.f32 %v814, %v1015
      %v1017 = vpop.f32.mrf.mxu0
      %1018 = vdwg.mxu0
      %v1019 = vmax.f32 %v941, 0.0
      %v1020 = vmax.f32 %v946, 0.0
      %v1021 = vmax.f32 %v951, 0.0
      %v1022 = vmax.f32 %v956, 0.0
      %v1023 = vmax.f32 %v961, 0.0
      %v1024 = vmax.f32 %v966, 0.0
      %v1025 = vmax.f32 %v971, 0.0
      %v1026 = vmax.f32 %v976, 0.0
      %v1027 = vmax.f32 %v981, 0.0
      %v1028 = vmax.f32 %v986, 0.0
      %v1029 = vmax.f32 %v991, 0.0
      %v1030 = vmax.f32 %v996, 0.0
      %v1031 = vmax.f32 %v1001, 0.0
      %v1032 = vmax.f32 %v1006, 0.0
      %v1033 = vmax.f32 %v1011, 0.0
      %v1034 = vmax.f32 %v1016, 0.0
      %v1035 = vld [vmem:[%s7] sm:$0xff]
      %v1036 = vld [vmem:[%s7 + $0x8] sm:$0xff]
      %v1037 = vld [vmem:[%s7 + $0x10] sm:$0xff]
      %v1038 = vld [vmem:[%s7 + $0x18] sm:$0xff]
      %v1039 = vld [vmem:[%s7 + $0x20] sm:$0xff]
      %v1040 = vld [vmem:[%s7 + $0x28] sm:$0x7]
      %v1041 = vld [vmem:[%s8] sm:$0x1]
      %v1043 = vlaneseq
      %v1044 = vshrl.u32 %v1043, 7
      %v1045 = vsub.s32 0, %v1044
      %v1046 = vrot.slane %v1041, %v1045
      %v1049 = vsel %vm590, %v1019, 0
      %v1052 = vsel %vm590, %v1020, 0
      %v1055 = vsel %vm590, %v1021, 0
      %v1058 = vsel %vm590, %v1022, 0
      %v1061 = vsel %vm590, %v1023, 0
      %v1064 = vsel %vm590, %v1024, 0
      %v1067 = vsel %vm590, %v1025, 0
      %v1070 = vsel %vm590, %v1026, 0
      %v1073 = vsel %vm590, %v1027, 0
      %v1076 = vsel %vm590, %v1028, 0
      %v1079 = vsel %vm590, %v1029, 0
      %v1082 = vsel %vm590, %v1030, 0
      %v1085 = vsel %vm590, %v1031, 0
      %v1088 = vsel %vm590, %v1032, 0
      %v1091 = vsel %vm590, %v1033, 0
      %v1094 = vsel %vm590, %v1034, 0
      %v1097 = vsel %vm590, %v1035, 0
      %v1100 = vsel %vm590, %v1036, 0
      %v1103 = vsel %vm590, %v1037, 0
      %v1106 = vsel %vm590, %v1038, 0
      %v1109 = vsel %vm590, %v1039, 0
      %v1112 = vsel %vm590, %v1040, 0
      %1114 = vmatprep.subr.mxu0 0.0
      %1115 = vmatpush1.xpose.msra.mxu0 0.0
      %1116 = vmatprep.subr.mxu0 0.0
      %1117 = vmatpush1.xpose.msra.mxu0 0.0
      %1118 = vmatprep.subr.mxu0 0.0
      %1119 = vmatpush1.xpose.msra.mxu0 0.0
      %1120 = vmatprep.subr.mxu0 0.0
      %1121 = vmatpush1.xpose.msra.mxu0 0.0
      %1122 = vmatprep.subr.mxu0 0.0
      %1123 = vmatpush1.xpose.msra.mxu0 0.0
      %1124 = vmatprep.subr.mxu0 0.0
      %1125 = vmatpush1.xpose.msra.mxu0 0.0
      %1126 = vmatprep.subr.mxu0 0.0
      %1127 = vmatpush1.xpose.msra.mxu0 0.0
      %1128 = vmatprep.subr.mxu0 0.0
      %1129 = vmatpush1.xpose.msra.mxu0 0.0
      %1130 = vmatprep.subr.mxu0 0.0
      %1131 = vmatpush1.xpose.msra.mxu0 0.0
      %1132 = vmatprep.subr.mxu0 0.0
      %1133 = vmatpush1.xpose.msra.mxu0 0.0
      %1134 = vmatprep.subr.mxu0 0.0
      %1135 = vmatpush1.xpose.msra.mxu0 %v1112
      %1136 = vmatprep.subr.mxu0 0.0
      %1137 = vmatpush1.xpose.msra.mxu0 %v1109
      %1138 = vmatprep.subr.mxu0 0.0
      %1139 = vmatpush1.xpose.msra.mxu0 %v1106
      %1140 = vmatprep.subr.mxu0 0.0
      %1141 = vmatpush1.xpose.msra.mxu0 %v1103
      %1142 = vmatprep.subr.mxu0 0.0
      %1143 = vmatpush1.xpose.msra.mxu0 %v1100
      %1144 = vmatprep.subr.mxu0 0.0
      %1145 = vmatpush1.xpose.msra.mxu0 %v1097
      %1146 = vmatprep.subr.mxu0 0.0
      %1147 = vmatpush2.xpose.msra.mxu0 0.0
      %1148 = vmatprep.subr.mxu0 0.0
      %1149 = vmatpush2.xpose.msra.mxu0 0.0
      %1150 = vmatprep.subr.mxu0 0.0
      %1151 = vmatpush2.xpose.msra.mxu0 0.0
      %1152 = vmatprep.subr.mxu0 0.0
      %1153 = vmatpush2.xpose.msra.mxu0 0.0
      %1154 = vmatprep.subr.mxu0 0.0
      %1155 = vmatpush2.xpose.msra.mxu0 0.0
      %1156 = vmatprep.subr.mxu0 0.0
      %1157 = vmatpush2.xpose.msra.mxu0 0.0
      %1158 = vmatprep.subr.mxu0 0.0
      %1159 = vmatpush2.xpose.msra.mxu0 0.0
      %1160 = vmatprep.subr.mxu0 0.0
      %1161 = vmatpush2.xpose.msra.mxu0 0.0
      %1162 = vmatprep.subr.mxu0 0.0
      %1163 = vmatpush2.xpose.msra.mxu0 0.0
      %1164 = vmatprep.subr.mxu0 0.0
      %1165 = vmatpush2.xpose.msra.mxu0 0.0
      %1166 = vmatprep.subr.mxu0 0.0
      %1167 = vmatpush2.xpose.msra.mxu0 0.0
      %1168 = vmatprep.subr.mxu0 0.0
      %1169 = vmatpush2.xpose.msra.mxu0 0.0
      %1170 = vmatprep.subr.mxu0 0.0
      %1171 = vmatpush2.xpose.msra.mxu0 0.0
      %1172 = vmatprep.subr.mxu0 0.0
      %1173 = vmatpush2.xpose.msra.mxu0 0.0
      %1174 = vmatprep.subr.mxu0 0.0
      %1175 = vmatpush2.xpose.msra.mxu0 0.0
      %1176 = vmatprep.subr.mxu0 0.0
      %1177 = vmatpush2.xpose.msra.mxu0 0.0
      %1178 = vmatprep.mubr.f32.mxu0 0.0
      %1179 = vmatmul.mubr.f32.gmra.mxu0 %v1049
      %v1180 = vpop.f32.mrf.mxu0
      %v1181 = vadd.f32 %v1046, %v1180
      %v1182 = vpop.f32.mrf.mxu0
      %1183 = vmatprep.mubr.f32.mxu0 0.0
      %1184 = vmatmul.mubr.f32.gmra.mxu0 %v1052
      %v1185 = vpop.f32.mrf.mxu0
      %v1186 = vadd.f32 %v1046, %v1185
      %v1187 = vpop.f32.mrf.mxu0
      %1188 = vmatprep.mubr.f32.mxu0 0.0
      %1189 = vmatmul.mubr.f32.gmra.mxu0 %v1055
      %v1190 = vpop.f32.mrf.mxu0
      %v1191 = vadd.f32 %v1046, %v1190
      %v1192 = vpop.f32.mrf.mxu0
      %1193 = vmatprep.mubr.f32.mxu0 0.0
      %1194 = vmatmul.mubr.f32.gmra.mxu0 %v1058
      %v1195 = vpop.f32.mrf.mxu0
      %v1196 = vadd.f32 %v1046, %v1195
      %v1197 = vpop.f32.mrf.mxu0
      %1198 = vmatprep.mubr.f32.mxu0 0.0
      %1199 = vmatmul.mubr.f32.gmra.mxu0 %v1061
      %v1200 = vpop.f32.mrf.mxu0
      %v1201 = vadd.f32 %v1046, %v1200
      %v1202 = vpop.f32.mrf.mxu0
      %1203 = vmatprep.mubr.f32.mxu0 0.0
      %1204 = vmatmul.mubr.f32.gmra.mxu0 %v1064
      %v1205 = vpop.f32.mrf.mxu0
      %v1206 = vadd.f32 %v1046, %v1205
      %v1207 = vpop.f32.mrf.mxu0
      %1208 = vmatprep.mubr.f32.mxu0 0.0
      %1209 = vmatmul.mubr.f32.gmra.mxu0 %v1067
      %v1210 = vpop.f32.mrf.mxu0
      %v1211 = vadd.f32 %v1046, %v1210
      %v1212 = vpop.f32.mrf.mxu0
      %1213 = vmatprep.mubr.f32.mxu0 0.0
      %1214 = vmatmul.mubr.f32.gmra.mxu0 %v1070
      %v1215 = vpop.f32.mrf.mxu0
      %v1216 = vadd.f32 %v1046, %v1215
      %v1217 = vpop.f32.mrf.mxu0
      %1218 = vmatprep.mubr.f32.mxu0 0.0
      %1219 = vmatmul.mubr.f32.gmra.mxu0 %v1073
      %v1220 = vpop.f32.mrf.mxu0
      %v1221 = vadd.f32 %v1046, %v1220
      %v1222 = vpop.f32.mrf.mxu0
      %1223 = vmatprep.mubr.f32.mxu0 0.0
      %1224 = vmatmul.mubr.f32.gmra.mxu0 %v1076
      %v1225 = vpop.f32.mrf.mxu0
      %v1226 = vadd.f32 %v1046, %v1225
      %v1227 = vpop.f32.mrf.mxu0
      %1228 = vmatprep.mubr.f32.mxu0 0.0
      %1229 = vmatmul.mubr.f32.gmra.mxu0 %v1079
      %v1230 = vpop.f32.mrf.mxu0
      %v1231 = vadd.f32 %v1046, %v1230
      %v1232 = vpop.f32.mrf.mxu0
      %1233 = vmatprep.mubr.f32.mxu0 0.0
      %1234 = vmatmul.mubr.f32.gmra.mxu0 %v1082
      %v1235 = vpop.f32.mrf.mxu0
      %v1236 = vadd.f32 %v1046, %v1235
      %v1237 = vpop.f32.mrf.mxu0
      %1238 = vmatprep.mubr.f32.mxu0 0.0
      %1239 = vmatmul.mubr.f32.gmra.mxu0 %v1085
      %v1240 = vpop.f32.mrf.mxu0
      %v1241 = vadd.f32 %v1046, %v1240
      %v1242 = vpop.f32.mrf.mxu0
      %1243 = vmatprep.mubr.f32.mxu0 0.0
      %1244 = vmatmul.mubr.f32.gmra.mxu0 %v1088
      %v1245 = vpop.f32.mrf.mxu0
      %v1246 = vadd.f32 %v1046, %v1245
      %v1247 = vpop.f32.mrf.mxu0
      %1248 = vmatprep.mubr.f32.mxu0 0.0
      %1249 = vmatmul.mubr.f32.gmra.mxu0 %v1091
      %v1250 = vpop.f32.mrf.mxu0
      %v1251 = vadd.f32 %v1046, %v1250
      %v1252 = vpop.f32.mrf.mxu0
      %1253 = vmatprep.mubr.f32.mxu0 0.0
      %1254 = vmatmul.mubr.f32.gmra.mxu0 %v1094
      %v1255 = vpop.f32.mrf.mxu0
      %v1256 = vadd.f32 %v1046, %v1255
      %v1257 = vpop.f32.mrf.mxu0
      %1258 = vdwg.mxu0
      %v1259 = vsub.f32 0.0, %v1181
      %v1260 = vsub.f32 0.0, %v1186
      %v1261 = vsub.f32 0.0, %v1191
      %v1262 = vsub.f32 0.0, %v1196
      %v1263 = vsub.f32 0.0, %v1201
      %v1264 = vsub.f32 0.0, %v1206
      %v1265 = vsub.f32 0.0, %v1211
      %v1266 = vsub.f32 0.0, %v1216
      %v1267 = vsub.f32 0.0, %v1221
      %v1268 = vsub.f32 0.0, %v1226
      %v1269 = vsub.f32 0.0, %v1231
      %v1270 = vsub.f32 0.0, %v1236
      %v1271 = vsub.f32 0.0, %v1241
      %v1272 = vsub.f32 0.0, %v1246
      %v1273 = vsub.f32 0.0, %v1251
      %v1274 = vsub.f32 0.0, %v1256
      %v1275 = vmul.f32 %v1259, 1.442695
      %v1276 = vpow.pop %v1275
      %v1277 = vmul.f32 %v1260, 1.442695
      %v1278 = vpow.pop %v1277
      %v1279 = vmul.f32 %v1261, 1.442695
      %v1280 = vpow.pop %v1279
      %v1281 = vmul.f32 %v1262, 1.442695
      %v1282 = vpow.pop %v1281
      %v1283 = vmul.f32 %v1263, 1.442695
      %v1284 = vpow.pop %v1283
      %v1285 = vmul.f32 %v1264, 1.442695
      %v1286 = vpow.pop %v1285
      %v1287 = vmul.f32 %v1265, 1.442695
      %v1288 = vpow.pop %v1287
      %v1289 = vmul.f32 %v1266, 1.442695
      %v1290 = vpow.pop %v1289
      %v1291 = vmul.f32 %v1267, 1.442695
      %v1292 = vpow.pop %v1291
      %v1293 = vmul.f32 %v1268, 1.442695
      %v1294 = vpow.pop %v1293
      %v1295 = vmul.f32 %v1269, 1.442695
      %v1296 = vpow.pop %v1295
      %v1297 = vmul.f32 %v1270, 1.442695
      %v1298 = vpow.pop %v1297
      %v1299 = vmul.f32 %v1271, 1.442695
      %v1300 = vpow.pop %v1299
      %v1301 = vmul.f32 %v1272, 1.442695
      %v1302 = vpow.pop %v1301
      %v1303 = vmul.f32 %v1273, 1.442695
      %v1304 = vpow.pop %v1303
      %v1305 = vmul.f32 %v1274, 1.442695
      %v1306 = vpow.pop %v1305
      %v1307 = vadd.f32 %v1276, 1.0
      %v1308 = vadd.f32 %v1278, 1.0
      %v1309 = vadd.f32 %v1280, 1.0
      %v1310 = vadd.f32 %v1282, 1.0
      %v1311 = vadd.f32 %v1284, 1.0
      %v1312 = vadd.f32 %v1286, 1.0
      %v1313 = vadd.f32 %v1288, 1.0
      %v1314 = vadd.f32 %v1290, 1.0
      %v1315 = vadd.f32 %v1292, 1.0
      %v1316 = vadd.f32 %v1294, 1.0
      %v1317 = vadd.f32 %v1296, 1.0
      %v1318 = vadd.f32 %v1298, 1.0
      %v1319 = vadd.f32 %v1300, 1.0
      %v1320 = vadd.f32 %v1302, 1.0
      %v1321 = vadd.f32 %v1304, 1.0
      %v1322 = vadd.f32 %v1306, 1.0
      %v1323 = vrcp.pop %v1307
      %v1324 = vmul.f32 1.0, %v1323
      %v1325 = vrcp.pop %v1308
      %v1326 = vmul.f32 1.0, %v1325
      %v1327 = vrcp.pop %v1309
      %v1328 = vmul.f32 1.0, %v1327
      %v1329 = vrcp.pop %v1310
      %v1330 = vmul.f32 1.0, %v1329
      %v1331 = vrcp.pop %v1311
      %v1332 = vmul.f32 1.0, %v1331
      %v1333 = vrcp.pop %v1312
      %v1334 = vmul.f32 1.0, %v1333
      %v1335 = vrcp.pop %v1313
      %v1336 = vmul.f32 1.0, %v1335
      %v1337 = vrcp.pop %v1314
      %v1338 = vmul.f32 1.0, %v1337
      %v1339 = vrcp.pop %v1315
      %v1340 = vmul.f32 1.0, %v1339
      %v1341 = vrcp.pop %v1316
      %v1342 = vmul.f32 1.0, %v1341
      %v1343 = vrcp.pop %v1317
      %v1344 = vmul.f32 1.0, %v1343
      %v1345 = vrcp.pop %v1318
      %v1346 = vmul.f32 1.0, %v1345
      %v1347 = vrcp.pop %v1319
      %v1348 = vmul.f32 1.0, %v1347
      %v1349 = vrcp.pop %v1320
      %v1350 = vmul.f32 1.0, %v1349
      %v1351 = vrcp.pop %v1321
      %v1352 = vmul.f32 1.0, %v1351
      %v1353 = vrcp.pop %v1322
      %v1354 = vmul.f32 1.0, %v1353
      %1355 = vst.msk [vmem:[%s334] sm:$0xff] %vm362, %v1324
      %1356 = vst.msk [vmem:[%s334 + $0x8] sm:$0xff] %vm362, %v1326
      %1357 = vst.msk [vmem:[%s334 + $0x10] sm:$0xff] %vm362, %v1328
      %1358 = vst.msk [vmem:[%s334 + $0x18] sm:$0xff] %vm362, %v1330
      %1359 = vst.msk [vmem:[%s334 + $0x20] sm:$0xff] %vm362, %v1332
      %1360 = vst.msk [vmem:[%s334 + $0x28] sm:$0xff] %vm362, %v1334
      %1361 = vst.msk [vmem:[%s334 + $0x30] sm:$0xff] %vm362, %v1336
      %1362 = vst.msk [vmem:[%s334 + $0x38] sm:$0xff] %vm362, %v1338
      %1363 = vst.msk [vmem:[%s334 + $0x40] sm:$0xff] %vm362, %v1340
      %1364 = vst.msk [vmem:[%s334 + $0x48] sm:$0xff] %vm362, %v1342
      %1365 = vst.msk [vmem:[%s334 + $0x50] sm:$0xff] %vm362, %v1344
      %1366 = vst.msk [vmem:[%s334 + $0x58] sm:$0xff] %vm362, %v1346
      %1367 = vst.msk [vmem:[%s334 + $0x60] sm:$0xff] %vm362, %v1348
      %1368 = vst.msk [vmem:[%s334 + $0x68] sm:$0xff] %vm362, %v1350
      %1369 = vst.msk [vmem:[%s334 + $0x70] sm:$0xff] %vm362, %v1352
      %1370 = vst.msk [vmem:[%s334 + $0x78] sm:$0xff] %vm362, %v1354
      %s1371 = smul.u32 16, %s20
      %p1372 = scmp.lt.s32.totalorder %s1371, 31
      %s1373 = scalar_select %p1372, %s1371, 31
      %s1374 = smul.addr %s1373, 8
      %s1375 = scalar_lea.vmem %s9, %s1374
      // Predicated region
      $region57: #{tpu_custom_call.1} parent=55 // pred_check
        %p1376 = pneg %p232
      $region58: #{tpu_custom_call.1} parent=55 // pred_check_branch
        %1378 = sbr.rel (%p1376) target = $region60
      $region59: #{tpu_custom_call.1} parent=55 // pred_region
        %s1379 = smul.u32 16, %s20
      $region60: #{tpu_custom_call.1} parent=55 // pred_fallthru
        _
    $region56: #{tpu_custom_call.1} parent=5 // pred_fallthru
      _
    %p1380 = scmp.le.s32.totalorder 2, %s15
    // Predicated region
    $region61: #{tpu_custom_call.1} parent=5 // pred_check
      %p1381 = pneg %p1380
    $region62: #{tpu_custom_call.1} parent=5 // pred_check_branch
      %1383 = sbr.rel (%p1381) target = $region64
    $region63: #{tpu_custom_call.1} parent=5 // pred_region
      %s1384 = ssub.s32 %s15, 2
      // Predicated region
      $region65: #{tpu_custom_call.1} parent=63 // pred_check
        %p1385 = pneg %p238
      $region66: #{tpu_custom_call.1} parent=63 // pred_check_branch
        %1387 = sbr.rel (%p1385) target = $region68
      $region67: #{tpu_custom_call.1} parent=63 // pred_region
        %s1388 = smul.u32 16, %s21
        %p1389 = scmp.lt.s32.totalorder %s1388, 31
        %s1390 = scalar_select %p1389, %s1388, 31
        %s1391 = smul.addr %s1390, 8
        %s1392 = scalar_lea.vmem %s9, %s1391
      $region68: #{tpu_custom_call.1} parent=63 // pred_fallthru
        _
    $region64: #{tpu_custom_call.1} parent=5 // pred_fallthru
      _
  $region6: #{tpu_custom_call.1} parent=0 // loop_footer
    %s19 = sadd.s32 1, %s15
  $region7: #{tpu_custom_call.1} parent=0 // loop_footer_branch
    %14 = sbr.rel target = $region3
  $region8: #{tpu_custom_call.1} parent=0 // loop_exit
    _

</llo_original>
